<compile_context>
chip_gen: v7x
topology: tpu7x:2x2x1
jax: 0.10.0
libtpu: 0.0.40
codegen_flags: <defaults>
</compile_context>

<pallas_src>
import functools

import jax
import jax.numpy as jnp
from jax.experimental import pallas as pl
from jax.experimental.pallas import tpu as pltpu

SMOOTH = 1e-05
_LANE = 128


def _round_up(x, m):
    return (x + m - 1) // m * m


def _dice_kernel(pred_ref, tgt_ref, dice_ref, inter_acc, sq_acc, oh_acc,
                 *, s_true, needs_mask):
    # pred_ref : (BN, C, TS)  logits tile (native dtype)
    # tgt_ref  : (BN, 1, TS)  int32 class indices tile
    # dice_ref : (1, BN, C)   per-channel dice (written on the last S tile only)
    # *_acc    : (BN, C)      f32 running spatial reductions
    s = pl.program_id(1)

    @pl.when(s == 0)
    def _init():
        inter_acc[...] = jnp.zeros_like(inter_acc)
        sq_acc[...] = jnp.zeros_like(sq_acc)
        oh_acc[...] = jnp.zeros_like(oh_acc)

    p = pred_ref[...].astype(jnp.float32)        # upcast in-kernel (keeps HBM traffic narrow)
    t = tgt_ref[...]                             # (BN, 1, TS) int32
    BN, C, TS = p.shape

    # numerically stable softmax over the channel (sublane) axis
    m = jnp.max(p, axis=1, keepdims=True)        # (BN, 1, TS)
    e = jnp.exp(p - m)                           # (BN, C, TS)
    denom = jnp.sum(e, axis=1, keepdims=True)    # (BN, 1, TS)
    sm = e * pl.reciprocal(denom, approx=True)   # EUP vrcp: separate VLIW slot

    # one-hot of target over channels (== scatter_(1, target, 1))
    ch = jax.lax.broadcasted_iota(jnp.int32, (BN, C, TS), 1)
    onehot = (ch == t).astype(jnp.float32)       # (BN, C, TS)

    if needs_mask:
        # zero out spatial padding columns (global column index >= true S)
        col = jax.lax.broadcasted_iota(jnp.int32, (BN, C, TS), 2) + s * TS
        valid = (col < s_true).astype(jnp.float32)
        sm = sm * valid
        onehot = onehot * valid

    # spatial (lane-axis) partial reductions, accumulated across S tiles
    inter_acc[...] += jnp.sum(sm * onehot, axis=2)       # (BN, C)
    sq_acc[...] += jnp.sum(sm * sm, axis=2)              # (BN, C)
    oh_acc[...] += jnp.sum(onehot, axis=2)               # (BN, C)

    @pl.when(s == pl.num_programs(1) - 1)
    def _finalize():
        inter = inter_acc[...]
        union = sq_acc[...] + oh_acc[...]
        dice = (2.0 * inter + SMOOTH) / (union + SMOOTH)
        dice_ref[...] = dice.reshape(dice_ref.shape)


@functools.partial(jax.jit, static_argnames=("weight",))
def dice_loss(predict, target, weight=None):
    """predict: (N, C, H, W) logits (f32 or bf16); target: (N, H, W) or (N, 1, H, W) ints."""
    N, C = predict.shape[:2]
    pred = predict.reshape(N, C, -1)                     # keep native dtype in HBM
    tgt = target.reshape(N, 1, -1).astype(jnp.int32)
    S = pred.shape[-1]

    # ---- spatial tile: multiple of 128 lanes, bounded so double-buffered
    # inputs + live (C, TS) f32 temporaries fit the default scoped VMEM on
    # v5e / v6e / v7x (no raised vmem_limit needed) ----
    budget = 1 << 20                                     # ~1 MiB per (C, TS) f32 temporary
    ts_cap = max(_LANE, min(4096, (budget // (4 * C)) // _LANE * _LANE))
    if S <= ts_cap:
        TS = _round_up(S, _LANE)
        S_pad = TS
    else:
        TS = ts_cap
        S_pad = _round_up(S, TS)
    n_s_tiles = S_pad // TS

    # ---- batch small samples per grid step (amortizes ~0.35 us/step), but
    # keep >= 2 sample blocks when N >= 2 so v7x megacore can split the
    # leading "parallel" axis ----
    per_sample_tile_bytes = TS * (C * pred.dtype.itemsize + tgt.dtype.itemsize)
    BN = 1
    if per_sample_tile_bytes <= (256 << 10):
        BN = max(1, min(N, (256 << 10) // per_sample_tile_bytes))
    BN = min(BN, max(1, (N + 1) // 2))
    N_pad = _round_up(N, BN)
    n_blocks = N_pad // BN

    if (S_pad != S) or (N_pad != N):
        pred = jnp.pad(pred, ((0, N_pad - N), (0, 0), (0, S_pad - S)))
        tgt = jnp.pad(tgt, ((0, N_pad - N), (0, 0), (0, S_pad - S)))

    kernel = functools.partial(_dice_kernel, s_true=S, needs_mask=(S_pad != S))

    dice = pl.pallas_call(
        kernel,
        out_shape=jax.ShapeDtypeStruct((n_blocks, BN, C), jnp.float32),
        grid_spec=pltpu.PrefetchScalarGridSpec(
            num_scalar_prefetch=0,
            grid=(n_blocks, n_s_tiles),
            in_specs=[
                pl.BlockSpec((BN, C, TS), lambda n, s: (n, 0, s)),
                pl.BlockSpec((BN, 1, TS), lambda n, s: (n, 0, s)),
            ],
            out_specs=pl.BlockSpec((1, BN, C), lambda n, s: (n, 0, 0)),
            scratch_shapes=[
                pltpu.VMEM((BN, C), jnp.float32),   # intersection
                pltpu.VMEM((BN, C), jnp.float32),   # sum(softmax^2)
                pltpu.VMEM((BN, C), jnp.float32),   # sum(onehot)
            ],
        ),
        compiler_params=pltpu.CompilerParams(
            dimension_semantics=("parallel", "arbitrary")),
    )(pred, tgt)                                         # (n_blocks, BN, C)

    dice = dice.reshape(N_pad, C)[:N]                    # drop sample padding

    if weight is not None:
        w = jnp.asarray(weight, jnp.float32)
        w = w / jnp.sum(w)
        dice = dice * w[None, :] * C
    return 1.0 - jnp.mean(dice)


def _reference(predict, target, weight=None):
    # pure-JAX reference mirroring the PyTorch module
    N, C = predict.shape[:2]
    p = predict.reshape(N, C, -1).astype(jnp.float32)
    t = target.reshape(N, -1).astype(jnp.int32)
    sm = jax.nn.softmax(p, axis=1)
    onehot = jax.nn.one_hot(t, C, axis=1, dtype=jnp.float32)
    inter = jnp.sum(sm * onehot, axis=2)
    union = jnp.sum(sm * sm, axis=2) + jnp.sum(onehot, axis=2)
    dice = (2 * inter + SMOOTH) / (union + SMOOTH)
    if weight is not None:
        w = jnp.asarray(weight, jnp.float32)
        w = w / jnp.sum(w)
        dice = dice * w[None, :] * C
    return 1.0 - jnp.mean(dice)


if __name__ == "__main__":
    key = jax.random.PRNGKey(0)

    # Case 1: lane-aligned spatial size, f32 logits (matches PyTorch defaults).
    k1, k2, key = jax.random.split(key, 3)
    N, C, H, W = 2, 4, 16, 16
    predict = jax.random.normal(k1, (N, C, H, W), dtype=jnp.float32)
    target = jax.random.randint(k2, (N, H, W), 0, C, dtype=jnp.int32)
    loss = dice_loss(predict, target)
    jax.block_until_ready(loss)
    ref = _reference(predict, target)
    assert jnp.allclose(loss, ref, atol=1e-3, rtol=1e-3), (loss, ref)

    # Case 2: unaligned spatial size (exercises the in-kernel spatial mask and
    # sample padding) plus class weights.
    k1, k2, key = jax.random.split(key, 3)
    N, C, H, W = 3, 5, 15, 15
    w = (1.0, 2.0, 0.5, 1.5, 1.0)
    predict = jax.random.normal(k1, (N, C, H, W), dtype=jnp.float32)
    target = jax.random.randint(k2, (N, H, W), 0, C, dtype=jnp.int32)
    loss = dice_loss(predict, target, weight=w)
    jax.block_until_ready(loss)
    ref = _reference(predict, target, weight=w)
    assert jnp.allclose(loss, ref, atol=1e-3, rtol=1e-3), (loss, ref)

    # Case 3: bf16 logits + multi-tile spatial reduction (exercises the
    # VMEM accumulators across S tiles).
    k1, k2, key = jax.random.split(key, 3)
    N, C, H, W = 2, 4, 128, 128
    predict = jax.random.normal(k1, (N, C, H, W), dtype=jnp.bfloat16)
    target = jax.random.randint(k2, (N, H, W), 0, C, dtype=jnp.int32)
    loss = dice_loss(predict, target)
    jax.block_until_ready(loss)
    ref = _reference(predict, target)
    assert jnp.allclose(loss, ref, atol=2e-3, rtol=2e-3), (loss, ref)

    print("KERNEL_OK")
</pallas_src>

<mosaic_0001>
module attributes {stable_mosaic.version = 11 : i64} {
  func.func @_dice_kernel(%arg0: i32, %arg1: i32, %arg2: memref<1x4x256xf32, #tpu.memory_space<vmem>>, %arg3: memref<1x1x256xi32, #tpu.memory_space<vmem>>, %arg4: memref<1x1x4xf32, #tpu.memory_space<vmem>>, %arg5: memref<1x4xf32, #tpu.memory_space<vmem>>, %arg6: memref<1x4xf32, #tpu.memory_space<vmem>>, %arg7: memref<1x4xf32, #tpu.memory_space<vmem>>) attributes {dimension_semantics = [#tpu.dimension_semantics<parallel>, #tpu.dimension_semantics<arbitrary>], iteration_bounds = array<i64: 2, 1>, scalar_prefetch = 0 : i64, scratch_operands = 3 : i64, tpu.core_type = #tpu.core_type<tc>, window_params = [{transform_indices = @transform_0, window_bounds = array<i64: 1, 4, 256>}, {transform_indices = @transform_1, window_bounds = array<i64: 1, 1, 256>}, {transform_indices = @transform_2, window_bounds = array<i64: 1, 1, 4>}]} {
    %c0_i32 = arith.constant 0 : i32
    %0 = arith.cmpi eq, %arg1, %c0_i32 : i32
    %1 = arith.extui %0 : i1 to i32
    %c0_i32_0 = arith.constant 0 : i32
    %2 = arith.cmpi ne, %1, %c0_i32_0 : i32
    scf.if %2 {
      %cst_24 = arith.constant 0.000000e+00 : f32
      %37 = vector.broadcast %cst_24 : f32 to vector<1x4xf32>
      %c0_25 = arith.constant 0 : index
      %c0_26 = arith.constant 0 : index
      %38 = vector.load %arg5[%c0_25, %c0_26] : memref<1x4xf32, #tpu.memory_space<vmem>>, vector<1x4xf32>
      tpu.vector_store %arg5[%c0_25, %c0_26], %37 {strides = array<i32>} : memref<1x4xf32, #tpu.memory_space<vmem>>, vector<1x4xf32>,
      %cst_27 = arith.constant 0.000000e+00 : f32
      %39 = vector.broadcast %cst_27 : f32 to vector<1x4xf32>
      %c0_28 = arith.constant 0 : index
      %c0_29 = arith.constant 0 : index
      %40 = vector.load %arg6[%c0_28, %c0_29] : memref<1x4xf32, #tpu.memory_space<vmem>>, vector<1x4xf32>
      tpu.vector_store %arg6[%c0_28, %c0_29], %39 {strides = array<i32>} : memref<1x4xf32, #tpu.memory_space<vmem>>, vector<1x4xf32>,
      %cst_30 = arith.constant 0.000000e+00 : f32
      %41 = vector.broadcast %cst_30 : f32 to vector<1x4xf32>
      %c0_31 = arith.constant 0 : index
      %c0_32 = arith.constant 0 : index
      %42 = vector.load %arg7[%c0_31, %c0_32] : memref<1x4xf32, #tpu.memory_space<vmem>>, vector<1x4xf32>
      tpu.vector_store %arg7[%c0_31, %c0_32], %41 {strides = array<i32>} : memref<1x4xf32, #tpu.memory_space<vmem>>, vector<1x4xf32>,
    } else {
    }
    %c0 = arith.constant 0 : index
    %c0_1 = arith.constant 0 : index
    %c0_2 = arith.constant 0 : index
    %3 = vector.load %arg2[%c0, %c0_1, %c0_2] : memref<1x4x256xf32, #tpu.memory_space<vmem>>, vector<1x4x256xf32>
    %c0_3 = arith.constant 0 : index
    %c0_4 = arith.constant 0 : index
    %c0_5 = arith.constant 0 : index
    %4 = vector.load %arg3[%c0_3, %c0_4, %c0_5] : memref<1x1x256xi32, #tpu.memory_space<vmem>>, vector<1x1x256xi32>
    %cst = arith.constant dense<0xFF800000> : vector<1x256xf32>
    %5 = vector.multi_reduction <maximumf>, %3, %cst [1] : vector<1x4x256xf32> to vector<1x256xf32>
    %6 = vector.shape_cast %5 : vector<1x256xf32> to vector<1x1x256xf32>
    %7 = vector.broadcast %6 : vector<1x1x256xf32> to vector<1x4x256xf32>
    %8 = arith.subf %3, %7 : vector<1x4x256xf32>
    %9 = math.exp %8 : vector<1x4x256xf32>
    %cst_6 = arith.constant dense<0.000000e+00> : vector<1x256xf32>
    %10 = vector.multi_reduction <add>, %9, %cst_6 [1] : vector<1x4x256xf32> to vector<1x256xf32>
    %11 = vector.shape_cast %10 : vector<1x256xf32> to vector<1x1x256xf32>
    %12 = tpu.reciprocal %11 {approx = true} : vector<1x1x256xf32> -> vector<1x1x256xf32>
    %13 = vector.broadcast %12 : vector<1x1x256xf32> to vector<1x4x256xf32>
    %14 = arith.mulf %9, %13 : vector<1x4x256xf32>
    %15 = tpu.iota {dimensions = array<i32: 1>} : vector<1x4x256xi32>
    %16 = vector.broadcast %4 : vector<1x1x256xi32> to vector<1x4x256xi32>
    %17 = arith.cmpi eq, %15, %16 : vector<1x4x256xi32>
    %18 = arith.extui %17 : vector<1x4x256xi1> to vector<1x4x256xi32>
    %19 = arith.sitofp %18 : vector<1x4x256xi32> to vector<1x4x256xf32>
    %c0_7 = arith.constant 0 : index
    %c0_8 = arith.constant 0 : index
    %20 = vector.load %arg5[%c0_7, %c0_8] : memref<1x4xf32, #tpu.memory_space<vmem>>, vector<1x4xf32>
    %21 = arith.mulf %14, %19 : vector<1x4x256xf32>
    %cst_9 = arith.constant dense<0.000000e+00> : vector<1x4xf32>
    %22 = vector.multi_reduction <add>, %21, %cst_9 [2] : vector<1x4x256xf32> to vector<1x4xf32>
    %23 = arith.addf %20, %22 : vector<1x4xf32>
    %c0_10 = arith.constant 0 : index
    %c0_11 = arith.constant 0 : index
    %24 = vector.load %arg5[%c0_10, %c0_11] : memref<1x4xf32, #tpu.memory_space<vmem>>, vector<1x4xf32>
    tpu.vector_store %arg5[%c0_10, %c0_11], %23 {strides = array<i32>} : memref<1x4xf32, #tpu.memory_space<vmem>>, vector<1x4xf32>,
    %c0_12 = arith.constant 0 : index
    %c0_13 = arith.constant 0 : index
    %25 = vector.load %arg6[%c0_12, %c0_13] : memref<1x4xf32, #tpu.memory_space<vmem>>, vector<1x4xf32>
    %26 = arith.mulf %14, %14 : vector<1x4x256xf32>
    %cst_14 = arith.constant dense<0.000000e+00> : vector<1x4xf32>
    %27 = vector.multi_reduction <add>, %26, %cst_14 [2] : vector<1x4x256xf32> to vector<1x4xf32>
    %28 = arith.addf %25, %27 : vector<1x4xf32>
    %c0_15 = arith.constant 0 : index
    %c0_16 = arith.constant 0 : index
    %29 = vector.load %arg6[%c0_15, %c0_16] : memref<1x4xf32, #tpu.memory_space<vmem>>, vector<1x4xf32>
    tpu.vector_store %arg6[%c0_15, %c0_16], %28 {strides = array<i32>} : memref<1x4xf32, #tpu.memory_space<vmem>>, vector<1x4xf32>,
    %c0_17 = arith.constant 0 : index
    %c0_18 = arith.constant 0 : index
    %30 = vector.load %arg7[%c0_17, %c0_18] : memref<1x4xf32, #tpu.memory_space<vmem>>, vector<1x4xf32>
    %cst_19 = arith.constant dense<0.000000e+00> : vector<1x4xf32>
    %31 = vector.multi_reduction <add>, %19, %cst_19 [2] : vector<1x4x256xf32> to vector<1x4xf32>
    %32 = arith.addf %30, %31 : vector<1x4xf32>
    %c0_20 = arith.constant 0 : index
    %c0_21 = arith.constant 0 : index
    %33 = vector.load %arg7[%c0_20, %c0_21] : memref<1x4xf32, #tpu.memory_space<vmem>>, vector<1x4xf32>
    tpu.vector_store %arg7[%c0_20, %c0_21], %32 {strides = array<i32>} : memref<1x4xf32, #tpu.memory_space<vmem>>, vector<1x4xf32>,
    %c0_i32_22 = arith.constant 0 : i32
    %34 = arith.cmpi eq, %arg1, %c0_i32_22 : i32
    %35 = arith.extui %34 : i1 to i32
    %c0_i32_23 = arith.constant 0 : i32
    %36 = arith.cmpi ne, %35, %c0_i32_23 : i32
    scf.if %36 {
      %c0_24 = arith.constant 0 : index
      %c0_25 = arith.constant 0 : index
      %37 = vector.load %arg5[%c0_24, %c0_25] : memref<1x4xf32, #tpu.memory_space<vmem>>, vector<1x4xf32>
      %c0_26 = arith.constant 0 : index
      %c0_27 = arith.constant 0 : index
      %38 = vector.load %arg6[%c0_26, %c0_27] : memref<1x4xf32, #tpu.memory_space<vmem>>, vector<1x4xf32>
      %c0_28 = arith.constant 0 : index
      %c0_29 = arith.constant 0 : index
      %39 = vector.load %arg7[%c0_28, %c0_29] : memref<1x4xf32, #tpu.memory_space<vmem>>, vector<1x4xf32>
      %40 = arith.addf %38, %39 : vector<1x4xf32>
      %cst_30 = arith.constant 2.000000e+00 : f32
      %41 = vector.broadcast %cst_30 : f32 to vector<1x4xf32>
      %42 = arith.mulf %41, %37 : vector<1x4xf32>
      %cst_31 = arith.constant 9.99999974E-6 : f32
      %43 = vector.broadcast %cst_31 : f32 to vector<1x4xf32>
      %44 = arith.addf %42, %43 : vector<1x4xf32>
      %cst_32 = arith.constant 9.99999974E-6 : f32
      %45 = vector.broadcast %cst_32 : f32 to vector<1x4xf32>
      %46 = arith.addf %40, %45 : vector<1x4xf32>
      %47 = arith.divf %44, %46 : vector<1x4xf32>
      %48 = vector.shape_cast %47 : vector<1x4xf32> to vector<1x1x4xf32>
      %c0_33 = arith.constant 0 : index
      %c0_34 = arith.constant 0 : index
      %c0_35 = arith.constant 0 : index
      %49 = vector.load %arg4[%c0_33, %c0_34, %c0_35] : memref<1x1x4xf32, #tpu.memory_space<vmem>>, vector<1x1x4xf32>
      tpu.vector_store %arg4[%c0_33, %c0_34, %c0_35], %48 {strides = array<i32>} : memref<1x1x4xf32, #tpu.memory_space<vmem>>, vector<1x1x4xf32>,
    } else {
    }
    return
  }
  func.func @transform_0(%arg0: i32, %arg1: i32) -> (i32, i32, i32) {
    %c0_i32 = arith.constant 0 : i32
    %c0_i32_0 = arith.constant 0 : i32
    return %arg0, %c0_i32, %arg1 : i32, i32, i32
  }
  func.func @transform_1(%arg0: i32, %arg1: i32) -> (i32, i32, i32) {
    %c0_i32 = arith.constant 0 : i32
    %c0_i32_0 = arith.constant 0 : i32
    return %arg0, %c0_i32, %arg1 : i32, i32, i32
  }
  func.func @transform_2(%arg0: i32, %arg1: i32) -> (i32, i32, i32) {
    %c0_i32 = arith.constant 0 : i32
    %c0_i32_0 = arith.constant 0 : i32
    %c0_i32_1 = arith.constant 0 : i32
    return %arg0, %c0_i32, %c0_i32_0 : i32, i32, i32
  }
}

</mosaic_0001>

<llo_original>
// kernel: dice_loss.1
$region0: #{dice_loss.1}
  #allocation0 [shape = 'u32[]', space=smem, size = 0x4, offset = 0x4, fixed_abs, tag = 'smem constant byte address 0x4 - core index']
  #allocation1 [shape = 'u32[144,128]{1,0:T(1,128)}', space=vmem, size = 0x12000, scoped, tag = 'internal scratch']
  #allocation2 [shape = 'f32[1,4]{1,0:T(1,128)}', space=vmem, size = 0x200, scoped, tag = 'scratch operand']
  #allocation3 [shape = 'f32[1,4]{1,0:T(1,128)}', space=vmem, size = 0x200, scoped, tag = 'scratch operand']
  #allocation4 [shape = 'f32[1,4]{1,0:T(1,128)}', space=vmem, size = 0x200, scoped, tag = 'scratch operand']
  %s0 = inlined_call_operand.vmem [shape: f32[2,4,256], index: 0, kind: input, shape index: {}]
  %s1 = inlined_call_operand.vmem [shape: s32[2,1,256], index: 1, kind: input, shape index: {}]
  %s2 = inlined_call_operand.vmem [shape: f32[2,1,4], index: 2, kind: output, shape index: {}]
  %s3 = sld [smem:[#allocation0]]
  $region49: #{dice_loss.1} parent=0
    _
  %s5 = ssub.s32 1, %s3
  %s6 = scalar_select 0, %s5, %s3
  loop: start=0, step=1, limit=4
  $region2: #{dice_loss.1} parent=0 // loop_pre_header
    _
  $region3: #{dice_loss.1} parent=0 // loop_header
    %s8 = sphi 0, %s12
    %p9 = scmp.ge.s32.totalorder %s8, 4
    %s15 = sphi 0, %s27
    %s16 = sphi 0, %s23
    %s17 = sphi 0, %s15
    %s18 = sphi 0, %s16
    %s19 = sphi 0, %s17
    %s20 = sphi 0, %s18
    %s32 = sphi 0, %s34
    %s35 = sphi 0, %s32
    %s36 = sphi 0, %s35
    %s52 = sphi 0, %s36
    %s60 = sphi 0, %s62
    %s63 = sphi 0, %s60
    %s64 = sphi 0, %s63
    %s80 = sphi 0, %s64
    %s86 = sphi 0, %s88
    %s89 = sphi 0, %s86
    %s90 = sphi 0, %s89
    %s106 = sphi 0, %s90
  $region4: #{dice_loss.1} parent=0 // loop_header_branch
    %11 = sbr.rel (%p9) target = $region8
  $region5: #{dice_loss.1} parent=0 // loop_body
    %s13 = ssub.s32 %s8, 1
    %s14 = ssub.s32 %s8, 2
    %s21 = sadd.s32 1, %s16
    %p22 = scmp.ge.s32.totalorder %s21, 1
    %s23 = scalar_select %p22, 0, %s21
    %s24 = sadd.s32 1, %s15
    %s25 = scalar_select %p22, %s24, %s15
    %p26 = scmp.ge.s32.totalorder %s25, 2
    %s27 = scalar_select %p26, 0, %s25
    %s28 = ssub.s32 %s15, %s27
    %s29 = ssub.s32 %s16, %s23
    %s30 = sor.u32 %s28, %s29
    %p31 = scmp.eq.s32.totalorder %s30, 0
    %s33 = sadd.s32 %s32, 1
    %s34 = scalar_select %p31, %s32, %s33
    %p37 = pneg %p31
    %p38 = scmp.eq.s32.totalorder %s8, 1
    %p39 = por %p37, %p38
    %p40 = scmp.ne.s32.totalorder %s32, %s35
    %p41 = scmp.eq.s32.totalorder %s8, 0
    %p42 = por %p40, %p41
    %p43 = scmp.ne.s32.totalorder %s32, %s35
    %p44 = scmp.eq.s32.totalorder %s13, 1
    %p45 = por %p43, %p44
    %p46 = scmp.ne.s32.totalorder %s35, %s36
    %p47 = scmp.eq.s32.totalorder %s13, 0
    %p48 = por %p46, %p47
    %p49 = scmp.ne.s32.totalorder %s35, %s36
    %p50 = scmp.eq.s32.totalorder %s14, 1
    %p51 = por %p49, %p50
    %p53 = scmp.ne.s32.totalorder %s36, %s52
    %p54 = scmp.eq.s32.totalorder %s14, 0
    %p55 = por %p53, %p54
    %s56 = ssub.s32 %s15, %s27
    %s57 = ssub.s32 %s16, %s23
    %s58 = sor.u32 %s56, %s57
    %p59 = scmp.eq.s32.totalorder %s58, 0
    %s61 = sadd.s32 %s60, 1
    %s62 = scalar_select %p59, %s60, %s61
    %p65 = pneg %p59
    %p66 = scmp.eq.s32.totalorder %s8, 1
    %p67 = por %p65, %p66
    %p68 = scmp.ne.s32.totalorder %s60, %s63
    %p69 = scmp.eq.s32.totalorder %s8, 0
    %p70 = por %p68, %p69
    %p71 = scmp.ne.s32.totalorder %s60, %s63
    %p72 = scmp.eq.s32.totalorder %s13, 1
    %p73 = por %p71, %p72
    %p74 = scmp.ne.s32.totalorder %s63, %s64
    %p75 = scmp.eq.s32.totalorder %s13, 0
    %p76 = por %p74, %p75
    %p77 = scmp.ne.s32.totalorder %s63, %s64
    %p78 = scmp.eq.s32.totalorder %s14, 1
    %p79 = por %p77, %p78
    %p81 = scmp.ne.s32.totalorder %s64, %s80
    %p82 = scmp.eq.s32.totalorder %s14, 0
    %p83 = por %p81, %p82
    %s84 = ssub.s32 %s15, %s27
    %p85 = scmp.eq.s32.totalorder %s84, 0
    %s87 = sadd.s32 %s86, 1
    %s88 = scalar_select %p85, %s86, %s87
    %p91 = pneg %p85
    %p92 = scmp.eq.s32.totalorder %s8, 1
    %p93 = por %p91, %p92
    %p94 = scmp.ne.s32.totalorder %s86, %s89
    %p95 = scmp.eq.s32.totalorder %s8, 0
    %p96 = por %p94, %p95
    %p97 = scmp.ne.s32.totalorder %s86, %s89
    %p98 = scmp.eq.s32.totalorder %s13, 1
    %p99 = por %p97, %p98
    %p100 = scmp.ne.s32.totalorder %s89, %s90
    %p101 = scmp.eq.s32.totalorder %s13, 0
    %p102 = por %p100, %p101
    %p103 = scmp.ne.s32.totalorder %s89, %s90
    %p104 = scmp.eq.s32.totalorder %s14, 1
    %p105 = por %p103, %p104
    %p107 = scmp.ne.s32.totalorder %s90, %s106
    %p108 = scmp.eq.s32.totalorder %s14, 0
    %p109 = por %p107, %p108
    %p110 = scmp.le.s32.totalorder 1, %s8
    %p111 = scmp.lt.s32.totalorder %s8, 3
    %p112 = pnand %p110, %p111
    %p113 = pneg %p112
    // Predicated region
    $region9: #{dice_loss.1} parent=5 // pred_check
      _
    $region10: #{dice_loss.1} parent=5 // pred_check_branch
      %115 = sbr.rel (%p112) target = $region12
    $region11: #{dice_loss.1} parent=5 // pred_region
      %s116 = ssub.s32 %s8, 1
    $region12: #{dice_loss.1} parent=5 // pred_fallthru
      _
    %p117 = scmp.lt.s32.totalorder %s8, 2
    // Predicated region
    $region13: #{dice_loss.1} parent=5 // pred_check
      %p118 = pneg %p117
    $region14: #{dice_loss.1} parent=5 // pred_check_branch
      %120 = sbr.rel (%p118) target = $region16
    $region15: #{dice_loss.1} parent=5 // pred_region
      // Predicated region
      $region17: #{dice_loss.1} parent=15 // pred_check
        %p121 = pneg %p42
      $region18: #{dice_loss.1} parent=15 // pred_check_branch
        %123 = sbr.rel (%p121) target = $region20
      $region19: #{dice_loss.1} parent=15 // pred_region
        %s124 = smul.u32 2, %s16
        %p125 = scmp.lt.s32.totalorder %s15, 1
        %s126 = scalar_select %p125, %s15, 1
        %p127 = scmp.lt.s32.totalorder %s124, 1
        %s128 = scalar_select %p127, %s124, 1
        %s129 = smul.addr %s126, 2
        %s130 = sadd.s32 %s128, %s129
        %s131 = smul.addr %s130, 4
        %s132 = scalar_lea.vmem %s0, %s131
        %s133 = smul.u32 2, %s16
      $region20: #{dice_loss.1} parent=15 // pred_fallthru
        _
      // Predicated region
      $region21: #{dice_loss.1} parent=15 // pred_check
        %p134 = pneg %p70
      $region22: #{dice_loss.1} parent=15 // pred_check_branch
        %136 = sbr.rel (%p134) target = $region24
      $region23: #{dice_loss.1} parent=15 // pred_region
        %s137 = smul.u32 2, %s16
        %p138 = scmp.lt.s32.totalorder %s15, 1
        %s139 = scalar_select %p138, %s15, 1
        %p140 = scmp.lt.s32.totalorder %s137, 1
        %s141 = scalar_select %p140, %s137, 1
        %s142 = smul.addr %s139, 2
        %s143 = sadd.s32 %s141, %s142
        %s144 = scalar_lea.vmem %s1, %s143
        %s145 = smul.u32 2, %s16
      $region24: #{dice_loss.1} parent=15 // pred_fallthru
        _
    $region16: #{dice_loss.1} parent=5 // pred_fallthru
      _
    %p146 = scmp.le.s32.totalorder 1, %s8
    %p147 = scmp.lt.s32.totalorder %s8, 3
    %p148 = pnand %p146, %p147
    %p149 = pneg %p148
    // Predicated region
    $region25: #{dice_loss.1} parent=5 // pred_check
      _
    $region26: #{dice_loss.1} parent=5 // pred_check_branch
      %151 = sbr.rel (%p148) target = $region28
    $region27: #{dice_loss.1} parent=5 // pred_region
      %s152 = ssub.s32 %s8, 1
      %s153 = smul.u32 2, %s18
      %p154 = scmp.lt.s32.totalorder %s17, 1
      %s155 = scalar_select %p154, %s17, 1
      %p156 = scmp.lt.s32.totalorder %s153, 1
      %s157 = scalar_select %p156, %s153, 1
      %s158 = smul.addr %s155, 2
      %s159 = sadd.s32 %s157, %s158
      %s160 = smul.addr %s159, 4
      %s161 = scalar_lea.vmem %s0, %s160
      %p162 = pneg %p48
      %p163 = pneg %p45
      %s164 = smul.u32 2, %s18
      %p165 = scmp.lt.s32.totalorder %s17, 1
      %s166 = scalar_select %p165, %s17, 1
      %p167 = scmp.lt.s32.totalorder %s164, 1
      %s168 = scalar_select %p167, %s164, 1
      %s169 = smul.addr %s166, 2
      %s170 = sadd.s32 %s168, %s169
      %s171 = scalar_lea.vmem %s1, %s170
      %p172 = pneg %p76
      %p173 = pneg %p73
      %p174 = pneg %p102
      %p175 = pneg %p99
      %p176 = scmp.lt.s32.totalorder %s17, 1
      %s177 = scalar_select %p176, %s17, 1
      %s178 = scalar_lea.vmem %s2, %s177
      %s179 = smul.u32 2, %s18
      %p180 = scmp.lt.s32.totalorder %s17, 1
      %s181 = scalar_select %p180, %s17, 1
      %p182 = scmp.lt.s32.totalorder %s179, 1
      %s183 = scalar_select %p182, %s179, 1
      %s184 = smul.addr %s181, 2
      %s185 = sadd.s32 %s183, %s184
      %s186 = smul.addr %s185, 4
      %s187 = scalar_lea.vmem %s0, %s186
      %s188 = smul.u32 2, %s18
      %s189 = smul.u32 2, %s18
      %p190 = scmp.lt.s32.totalorder %s17, 1
      %s191 = scalar_select %p190, %s17, 1
      %p192 = scmp.lt.s32.totalorder %s189, 1
      %s193 = scalar_select %p192, %s189, 1
      %s194 = smul.addr %s191, 2
      %s195 = sadd.s32 %s193, %s194
      %s196 = scalar_lea.vmem %s1, %s195
      %s197 = smul.u32 2, %s18
      %p198 = scmp.lt.s32.totalorder %s17, 1
      %s199 = scalar_select %p198, %s17, 1
      %s200 = scalar_lea.vmem %s2, %s199
      %p201 = scmp.eq.s32.totalorder %s18, 0
      // Predicated region
      $region29: #{dice_loss.1} parent=27 // pred_check
        %p202 = pneg %p201
      $region30: #{dice_loss.1} parent=27 // pred_check_branch
        %204 = sbr.rel (%p202) target = $region32
      $region31: #{dice_loss.1} parent=27 // pred_region
        %vm205 = vcmask 24576
        %206 = vst.msk [vmem:[#allocation2] sm:$0x1] %vm205, 0.0
        %207 = vst.msk [vmem:[#allocation3] sm:$0x1] %vm205, 0.0
        %208 = vst.msk [vmem:[#allocation4] sm:$0x1] %vm205, 0.0
      $region32: #{dice_loss.1} parent=27 // pred_fallthru
        _
      %v209 = vld [vmem:[%s187] sm:$0xff]
      %v210 = vld [vmem:[%s196] sm:$0x3]
      %v212 = vcombine.high %v209, %v209
      %vm214 = vcmask 1043456
      %v215 = vsel %vm214, %v209, -inf
      %v216 = vrot.slane %v215, 4
      %v217 = vmax.f32 %v215, %v216
      %v218 = vrot.slane %v217, 2
      %v219 = vmax.f32 %v217, %v218
      %v220 = vrot.slane %v219, 1
      %v221 = vmax.f32 %v219, %v220
      %v222 = vsel %vm214, %v212, -inf
      %v223 = vrot.slane %v222, 4
      %v224 = vmax.f32 %v222, %v223
      %v225 = vrot.slane %v224, 2
      %v226 = vmax.f32 %v224, %v225
      %v227 = vrot.slane %v226, 1
      %v228 = vmax.f32 %v226, %v227
      %v231 = vcombine.low %v221, %v228
      %v233 = vsub.f32 %v209, %v231
      %v234 = vmul.f32 %v233, 1.442695
      %v235 = vpow.pop %v234
      %v237 = vcombine.high %v235, %v235
      %v239 = vsel %vm214, %v235, 0.0
      %v240 = vrot.slane %v239, 4
      %v241 = vadd.f32 %v239, %v240
      %v242 = vrot.slane %v241, 2
      %v243 = vadd.f32 %v241, %v242
      %v244 = vrot.slane %v243, 1
      %v245 = vadd.f32 %v243, %v244
      %v246 = vsel %vm214, %v237, 0.0
      %v247 = vrot.slane %v246, 4
      %v248 = vadd.f32 %v246, %v247
      %v249 = vrot.slane %v248, 2
      %v250 = vadd.f32 %v248, %v249
      %v251 = vrot.slane %v250, 1
      %v252 = vadd.f32 %v250, %v251
      %v253 = vrcp.pop %v245
      %v254 = vrcp.pop %v252
      %v257 = vcombine.low %v253, %v254
      %v259 = vmul.f32 %v235, %v257
      %v260 = vlaneseq
      %v261 = vshrl.u32 %v260, 7
      %v262 = vlaneseq
      %v263 = vshrl.u32 %v262, 7
      %v264 = vsub.s32 0, %v263
      %v265 = vrot.slane %v210, %v264
      %v266 = vlaneseq
      %v267 = vshrl.u32 %v266, 7
      %v268 = vsub.s32 1, %v267
      %v269 = vrot.slane %v210, %v268
      %vm270 = vcmp.eq.s32.totalorder %v261, %v265
      %vm271 = vcmp.eq.s32.totalorder %v261, %v269
      %v272 = vsel %vm270, 1, 0
      %v273 = vsel %vm271, 1, 0
      %v274 = vcvt.s32.f32 %v272
      %v275 = vcvt.s32.f32 %v273
      %v276 = vld [vmem:[#allocation2] sm:$0x1]
      %v279 = vcombine.low %v274, %v275
      %v281 = vmul.f32 %v259, %v279
      %v283 = vcombine.high %v281, %v281
      %v285 = vsel %vm214, %v281, 0.0
      %v286 = vsel %vm214, %v283, 0.0
      %v287 = vadd.f32 %v285, %v286
      %288 = vadd.xlane.f32.xlu0 %v287
      %v289 = vpop.xlane.xlu0 %288
      %v291 = vlaneseq
      %v292 = vshrl.u32 %v291, 7
      %v293 = vsub.s32 0, %v292
      %v294 = vrot.slane %v289, %v293
      %v295 = vlaneseq
      %v296 = vshrl.u32 %v295, 7
      %v297 = vsub.s32 1, %v296
      %v298 = vrot.slane %v289, %v297
      %v299 = vlaneseq
      %v300 = vshrl.u32 %v299, 7
      %v301 = vsub.s32 2, %v300
      %v302 = vrot.slane %v289, %v301
      %v303 = vlaneseq
      %v304 = vshrl.u32 %v303, 7
      %v305 = vsub.s32 3, %v304
      %v306 = vrot.slane %v289, %v305
      %v307 = vcombine.low %v294, %v298
      %v308 = vcombine.low %v302, %v306
      %v310 = vunpack.c.l.s4 1966171168
      %v311 = vunpack.c.0.s8 %v310
      %v312 = vlaneseq
      %v313 = vshrl.u32 %v312, 7
      %v314 = vsub.s32 %v311, %v313
      %v315 = vrot.slane %v307, %v314
      %v317 = vunpack.c.l.s4 1966171168
      %v318 = vunpack.c.0.s8 %v317
      %v319 = vlaneseq
      %v320 = vshrl.u32 %v319, 7
      %v321 = vsub.s32 %v318, %v320
      %v322 = vrot.slane %v308, %v321
      %v323 = vcombine.low %v315, %v322
      %v325 = vunpack.c.l.s4 1966171168
      %v326 = vunpack.c.0.s8 %v325
      %v327 = vlaneseq
      %v328 = vshrl.u32 %v327, 7
      %v329 = vsub.s32 %v326, %v328
      %v330 = vrot.slane %v323, %v329
      %331 = vset.pattern.permute.xlu0 0
      %332 = vperm.xlu0 %331, %v330
      %v333 = vpop.permute.xlu0 %332
      %v334 = vlaneseq
      %v335 = vand.u32 %v334, 127
      %v336 = vlaneseq
      %v337 = vshrl.u32 %v336, 7
      %v338 = vsub.s32 %v335, %v337
      %v339 = vrot.slane %v333, %v338
      %v341 = vunpack.c.l.s4 1966171168
      %v342 = vunpack.c.0.s8 %v341
      %v343 = vlaneseq
      %v344 = vshrl.u32 %v343, 7
      %v345 = vsub.s32 %v342, %v344
      %v346 = vrot.slane %v339, %v345
      %v348 = vunpack.c.l.s4 1966171168
      %v349 = vunpack.c.0.s8 %v348
      %v350 = vlaneseq
      %v351 = vshrl.u32 %v350, 7
      %v352 = vsub.s32 %v349, %v351
      %v353 = vrot.slane %v346, %v352
      %v355 = vadd.f32 %v276, %v353
      %vm356 = vcmask 24576
      %357 = vst.msk [vmem:[#allocation2] sm:$0x1] %vm356, %v355
      %v358 = vld [vmem:[#allocation3] sm:$0x1]
      %v359 = vmul.f32 %v259, %v259
      %v361 = vcombine.high %v359, %v359
      %v363 = vsel %vm214, %v359, 0.0
      %v364 = vsel %vm214, %v361, 0.0
      %v365 = vadd.f32 %v363, %v364
      %366 = vadd.xlane.f32.xlu0 %v365
      %v367 = vpop.xlane.xlu0 %366
      %v369 = vlaneseq
      %v370 = vshrl.u32 %v369, 7
      %v371 = vsub.s32 0, %v370
      %v372 = vrot.slane %v367, %v371
      %v373 = vlaneseq
      %v374 = vshrl.u32 %v373, 7
      %v375 = vsub.s32 1, %v374
      %v376 = vrot.slane %v367, %v375
      %v377 = vlaneseq
      %v378 = vshrl.u32 %v377, 7
      %v379 = vsub.s32 2, %v378
      %v380 = vrot.slane %v367, %v379
      %v381 = vlaneseq
      %v382 = vshrl.u32 %v381, 7
      %v383 = vsub.s32 3, %v382
      %v384 = vrot.slane %v367, %v383
      %v385 = vcombine.low %v372, %v376
      %v386 = vcombine.low %v380, %v384
      %v388 = vunpack.c.l.s4 1966171168
      %v389 = vunpack.c.0.s8 %v388
      %v390 = vlaneseq
      %v391 = vshrl.u32 %v390, 7
      %v392 = vsub.s32 %v389, %v391
      %v393 = vrot.slane %v385, %v392
      %v395 = vunpack.c.l.s4 1966171168
      %v396 = vunpack.c.0.s8 %v395
      %v397 = vlaneseq
      %v398 = vshrl.u32 %v397, 7
      %v399 = vsub.s32 %v396, %v398
      %v400 = vrot.slane %v386, %v399
      %v401 = vcombine.low %v393, %v400
      %v403 = vunpack.c.l.s4 1966171168
      %v404 = vunpack.c.0.s8 %v403
      %v405 = vlaneseq
      %v406 = vshrl.u32 %v405, 7
      %v407 = vsub.s32 %v404, %v406
      %v408 = vrot.slane %v401, %v407
      %409 = vset.pattern.permute.xlu0 0
      %410 = vperm.xlu0 %409, %v408
      %v411 = vpop.permute.xlu0 %410
      %v412 = vlaneseq
      %v413 = vshrl.u32 %v412, 7
      %v414 = vsub.s32 %v335, %v413
      %v415 = vrot.slane %v411, %v414
      %v417 = vunpack.c.l.s4 1966171168
      %v418 = vunpack.c.0.s8 %v417
      %v419 = vlaneseq
      %v420 = vshrl.u32 %v419, 7
      %v421 = vsub.s32 %v418, %v420
      %v422 = vrot.slane %v415, %v421
      %v424 = vunpack.c.l.s4 1966171168
      %v425 = vunpack.c.0.s8 %v424
      %v426 = vlaneseq
      %v427 = vshrl.u32 %v426, 7
      %v428 = vsub.s32 %v425, %v427
      %v429 = vrot.slane %v422, %v428
      %v431 = vadd.f32 %v358, %v429
      %432 = vst.msk [vmem:[#allocation3] sm:$0x1] %vm356, %v431
      %v433 = vld [vmem:[#allocation4] sm:$0x1]
      %v434 = vsel %vm214, %v274, 0.0
      %v435 = vsel %vm214, %v275, 0.0
      %v436 = vadd.f32 %v434, %v435
      %437 = vadd.xlane.f32.xlu0 %v436
      %v438 = vpop.xlane.xlu0 %437
      %v440 = vlaneseq
      %v441 = vshrl.u32 %v440, 7
      %v442 = vsub.s32 0, %v441
      %v443 = vrot.slane %v438, %v442
      %v444 = vlaneseq
      %v445 = vshrl.u32 %v444, 7
      %v446 = vsub.s32 1, %v445
      %v447 = vrot.slane %v438, %v446
      %v448 = vlaneseq
      %v449 = vshrl.u32 %v448, 7
      %v450 = vsub.s32 2, %v449
      %v451 = vrot.slane %v438, %v450
      %v452 = vlaneseq
      %v453 = vshrl.u32 %v452, 7
      %v454 = vsub.s32 3, %v453
      %v455 = vrot.slane %v438, %v454
      %v456 = vcombine.low %v443, %v447
      %v457 = vcombine.low %v451, %v455
      %v459 = vunpack.c.l.s4 1966171168
      %v460 = vunpack.c.0.s8 %v459
      %v461 = vlaneseq
      %v462 = vshrl.u32 %v461, 7
      %v463 = vsub.s32 %v460, %v462
      %v464 = vrot.slane %v456, %v463
      %v466 = vunpack.c.l.s4 1966171168
      %v467 = vunpack.c.0.s8 %v466
      %v468 = vlaneseq
      %v469 = vshrl.u32 %v468, 7
      %v470 = vsub.s32 %v467, %v469
      %v471 = vrot.slane %v457, %v470
      %v472 = vcombine.low %v464, %v471
      %v474 = vunpack.c.l.s4 1966171168
      %v475 = vunpack.c.0.s8 %v474
      %v476 = vlaneseq
      %v477 = vshrl.u32 %v476, 7
      %v478 = vsub.s32 %v475, %v477
      %v479 = vrot.slane %v472, %v478
      %480 = vset.pattern.permute.xlu0 0
      %481 = vperm.xlu0 %480, %v479
      %v482 = vpop.permute.xlu0 %481
      %v483 = vlaneseq
      %v484 = vshrl.u32 %v483, 7
      %v485 = vsub.s32 %v335, %v484
      %v486 = vrot.slane %v482, %v485
      %v488 = vunpack.c.l.s4 1966171168
      %v489 = vunpack.c.0.s8 %v488
      %v490 = vlaneseq
      %v491 = vshrl.u32 %v490, 7
      %v492 = vsub.s32 %v489, %v491
      %v493 = vrot.slane %v486, %v492
      %v495 = vunpack.c.l.s4 1966171168
      %v496 = vunpack.c.0.s8 %v495
      %v497 = vlaneseq
      %v498 = vshrl.u32 %v497, 7
      %v499 = vsub.s32 %v496, %v498
      %v500 = vrot.slane %v493, %v499
      %v502 = vadd.f32 %v433, %v500
      %503 = vst.msk [vmem:[#allocation4] sm:$0x1] %vm356, %v502
      // Predicated region
      $region33: #{dice_loss.1} parent=27 // pred_check
        %p504 = pneg %p201
      $region34: #{dice_loss.1} parent=27 // pred_check_branch
        %506 = sbr.rel (%p504) target = $region36
      $region35: #{dice_loss.1} parent=27 // pred_region
        %v507 = vld [vmem:[#allocation2] sm:$0x1]
        %v508 = vld [vmem:[#allocation3] sm:$0x1]
        %v509 = vld [vmem:[#allocation4] sm:$0x1]
        %v510 = vadd.f32 %v508, %v509
        %v511 = vmul.f32 %v507, 2.0
        %v512 = vadd.f32 %v511, 1e-05
        %v513 = vadd.f32 %v510, 1e-05
        %v514 = vrcp.pop %v513
        %v515 = vmul.f32 %v512, %v514
        %516 = vst.msk [vmem:[%s200] sm:$0x1] %vm356, %v515
      $region36: #{dice_loss.1} parent=27 // pred_fallthru
        _
      %p517 = scmp.lt.s32.totalorder %s17, 1
      %s518 = scalar_select %p517, %s17, 1
      %s519 = scalar_lea.vmem %s2, %s518
      // Predicated region
      $region37: #{dice_loss.1} parent=27 // pred_check
        %p520 = pneg %p99
      $region38: #{dice_loss.1} parent=27 // pred_check_branch
        %522 = sbr.rel (%p520) target = $region40
      $region39: #{dice_loss.1} parent=27 // pred_region
        _
      $region40: #{dice_loss.1} parent=27 // pred_fallthru
        _
    $region28: #{dice_loss.1} parent=5 // pred_fallthru
      _
    %p523 = scmp.le.s32.totalorder 2, %s8
    // Predicated region
    $region41: #{dice_loss.1} parent=5 // pred_check
      %p524 = pneg %p523
    $region42: #{dice_loss.1} parent=5 // pred_check_branch
      %526 = sbr.rel (%p524) target = $region44
    $region43: #{dice_loss.1} parent=5 // pred_region
      %s527 = ssub.s32 %s8, 2
      // Predicated region
      $region45: #{dice_loss.1} parent=43 // pred_check
        %p528 = pneg %p105
      $region46: #{dice_loss.1} parent=43 // pred_check_branch
        %530 = sbr.rel (%p528) target = $region48
      $region47: #{dice_loss.1} parent=43 // pred_region
        %p531 = scmp.lt.s32.totalorder %s19, 1
        %s532 = scalar_select %p531, %s19, 1
        %s533 = scalar_lea.vmem %s2, %s532
      $region48: #{dice_loss.1} parent=43 // pred_fallthru
        _
    $region44: #{dice_loss.1} parent=5 // pred_fallthru
      _
  $region6: #{dice_loss.1} parent=0 // loop_footer
    %s12 = sadd.s32 1, %s8
  $region7: #{dice_loss.1} parent=0 // loop_footer_branch
    %7 = sbr.rel target = $region3
  $region8: #{dice_loss.1} parent=0 // loop_exit
    _

</llo_original>
